<compile_context>
chip_gen: v7x
topology: tpu7x:2x2x1
jax: 0.10.0
libtpu: 0.0.40
codegen_flags: <defaults>
</compile_context>

<pallas_src>
import functools
import math

import jax
import jax.numpy as jnp
from jax import lax
from jax.experimental import pallas as pl
from jax.experimental.pallas import tpu as pltpu


HID1 = 128
HID2 = 64
LANES = 128
SUBLANES = 8


def _round_up(n, m):
    return ((n + m - 1) // m) * m


def _policy_kernel(xt_ref, w1t_ref, b1t_ref, w2t_ref, b2t_ref, wht_ref,
                   bht_ref, out_ref, *, action_dim):
    xt = xt_ref[...]                                              # (state_dim, TB)

    # fc1 + relu   (h1ᵀ = W1ᵀ xᵀ + b1)
    h1 = jnp.dot(w1t_ref[...], xt,
                 preferred_element_type=jnp.float32) + b1t_ref[...]
    h1 = jnp.maximum(h1, 0.0)                                     # (HID1, TB)

    # fc2 + relu   (h2ᵀ = W2ᵀ h1ᵀ + b2)
    h2 = jnp.dot(w2t_ref[...], h1,
                 preferred_element_type=jnp.float32) + b2t_ref[...]
    h2 = jnp.maximum(h2, 0.0)                                     # (HID2, TB)

    # fused mu/std heads: single MXU dot; rows [0,A) -> mu logits, [A,2A) -> std
    z = jnp.dot(wht_ref[...], h2,
                preferred_element_type=jnp.float32) + bht_ref[...]  # (P, TB)

    mu = jnp.tanh(z)
    # softplus with threshold 20 (matches torch.nn.functional.softplus)
    sp = jnp.where(z > 20.0, z, jnp.log1p(jnp.exp(jnp.minimum(z, 20.0))))

    row = lax.broadcasted_iota(jnp.int32, z.shape, 0)             # cheap: (P, TB)
    out_ref[...] = jnp.where(row < action_dim, mu, sp)


def prepare_params(params):
    """One-time parameter prep (hoist out of the RL loop).

    Transposes all weights to the batch-on-lanes orientation and fuses the two
    heads into one (P, HID2) slab / (P, 1) bias, P = round_up(2*A, 8).
    Returns (prep_dict, action_dim).
    """
    A = params["wmu"].shape[1]
    P = _round_up(2 * A, SUBLANES)

    w1t = jnp.asarray(params["w1"], jnp.float32).T                # (HID1, state_dim)
    b1t = jnp.asarray(params["b1"], jnp.float32).reshape(HID1, 1)
    w2t = jnp.asarray(params["w2"], jnp.float32).T                # (HID2, HID1)
    b2t = jnp.asarray(params["b2"], jnp.float32).reshape(HID2, 1)

    wht = jnp.zeros((P, HID2), jnp.float32)
    wht = wht.at[:A].set(jnp.asarray(params["wmu"], jnp.float32).T)
    wht = wht.at[A:2 * A].set(jnp.asarray(params["wstd"], jnp.float32).T)
    bht = jnp.zeros((P, 1), jnp.float32)
    bht = bht.at[:A, 0].set(jnp.asarray(params["bmu"], jnp.float32).reshape(-1))
    bht = bht.at[A:2 * A, 0].set(jnp.asarray(params["bstd"], jnp.float32).reshape(-1))

    return dict(w1t=w1t, b1t=b1t, w2t=w2t, b2t=b2t, wht=wht, bht=bht), A


@functools.partial(jax.jit, static_argnames=("action_dim", "tb_max"))
def policy_forward(x, prep, *, action_dim, tb_max=2048):
    """x: (B, state_dim). Returns (mu, std), each (B, action_dim), float32."""
    x = x.astype(jnp.float32)
    B, state_dim = x.shape
    A = action_dim
    P = prep["wht"].shape[0]

    # --- batch tiling on the lane axis -----------------------------------
    b_pad = _round_up(B, LANES)
    if b_pad >= 2 * LANES:
        # >= 2 grid steps so the "parallel" axis shards across both v7x TCs;
        # cap tile at tb_max to amortize per-step overhead without VMEM risk.
        tb = min(tb_max, _round_up((b_pad + 1) // 2, LANES))
    else:
        tb = b_pad
    b_pad = _round_up(b_pad, tb)

    xt = jnp.pad(x, ((0, b_pad - B), (0, 0))).T                   # (state_dim, b_pad)

    grid = (b_pad // tb,)
    resident = lambda arr: pl.BlockSpec(arr.shape, lambda i: (0, 0))

    out = pl.pallas_call(
        functools.partial(_policy_kernel, action_dim=A),
        out_shape=jax.ShapeDtypeStruct((P, b_pad), jnp.float32),
        grid=grid,
        in_specs=[
            pl.BlockSpec((state_dim, tb), lambda i: (0, i)),      # xᵀ: lane-tiled batch
            resident(prep["w1t"]), resident(prep["b1t"]),
            resident(prep["w2t"]), resident(prep["b2t"]),
            resident(prep["wht"]), resident(prep["bht"]),
        ],
        out_specs=pl.BlockSpec((P, tb), lambda i: (0, i)),
        compiler_params=pltpu.CompilerParams(
            dimension_semantics=("parallel",)),
    )(xt, prep["w1t"], prep["b1t"], prep["w2t"], prep["b2t"],
      prep["wht"], prep["bht"])

    mu = out[:A, :B].T
    std = out[A:2 * A, :B].T
    return mu, std


def policy_net_continuous(x, params, *, tb_max=2048):
    """Convenience wrapper (prep not hoisted). Prefer prepare_params + policy_forward in loops."""
    prep, A = prepare_params(params)
    return policy_forward(x, prep, action_dim=A, tb_max=tb_max)


def init_params(key, state_dim, action_dim):
    """Deterministic init mimicking torch.nn.Linear default (U[-1/sqrt(fan_in), ...])."""
    def linear(k, fan_in, fan_out):
        kw, kb = jax.random.split(k)
        bound = 1.0 / math.sqrt(fan_in)
        # stored as (in, out) so reference does x @ W
        w = jax.random.uniform(kw, (fan_in, fan_out), jnp.float32, -bound, bound)
        b = jax.random.uniform(kb, (1, fan_out), jnp.float32, -bound, bound)
        return w, b

    k1, k2, k3, k4 = jax.random.split(key, 4)
    w1, b1 = linear(k1, state_dim, HID1)
    w2, b2 = linear(k2, HID1, HID2)
    wmu, bmu = linear(k3, HID2, action_dim)
    wstd, bstd = linear(k4, HID2, action_dim)
    return dict(w1=w1, b1=b1, w2=w2, b2=b2,
                wmu=wmu, bmu=bmu, wstd=wstd, bstd=bstd)


def reference_forward(x, p):
    h1 = jnp.maximum(x @ p["w1"] + p["b1"], 0.0)
    h2 = jnp.maximum(h1 @ p["w2"] + p["b2"], 0.0)
    mu = jnp.tanh(h2 @ p["wmu"] + p["bmu"])
    std = jax.nn.softplus(h2 @ p["wstd"] + p["bstd"])
    return mu, std


if __name__ == "__main__":
    key = jax.random.PRNGKey(0)
    kx, kp, kx2, kx3 = jax.random.split(key, 4)

    state_dim, action_dim = 8, 4
    params = init_params(kp, state_dim, action_dim)
    prep, A = prepare_params(params)   # hoisted one-time prep

    def check(xb):
        mu, std = policy_forward(xb, prep, action_dim=A)
        jax.block_until_ready((mu, std))
        mu_ref, std_ref = reference_forward(xb, params)
        assert mu.shape == (xb.shape[0], action_dim)
        assert std.shape == (xb.shape[0], action_dim)
        assert jnp.allclose(mu, mu_ref, atol=1e-5, rtol=1e-5)
        assert jnp.allclose(std, std_ref, atol=1e-5, rtol=1e-5)
        assert bool(jnp.all(std > 0.0))

    # small primary case
    x = jax.random.normal(kx, (2, state_dim), dtype=jnp.float32)
    check(x)

    # tail-padding path (B not a multiple of 128)
    x2 = jax.random.normal(kx2, (19, state_dim), dtype=jnp.float32)
    check(x2)

    # multi-tile grid path (>= 2 grid steps, exercises v7x dual-core split)
    x3 = jax.random.normal(kx3, (300, state_dim), dtype=jnp.float32)
    check(x3)

    print("KERNEL_OK")
</pallas_src>

<mosaic_0001>
module attributes {stable_mosaic.version = 11 : i64} {
  func.func @_policy_kernel(%arg0: i32, %arg1: memref<8x128xf32, #tpu.memory_space<vmem>>, %arg2: memref<128x8xf32, #tpu.memory_space<vmem>>, %arg3: memref<128x1xf32, #tpu.memory_space<vmem>>, %arg4: memref<64x128xf32, #tpu.memory_space<vmem>>, %arg5: memref<64x1xf32, #tpu.memory_space<vmem>>, %arg6: memref<8x64xf32, #tpu.memory_space<vmem>>, %arg7: memref<8x1xf32, #tpu.memory_space<vmem>>, %arg8: memref<8x128xf32, #tpu.memory_space<vmem>>) attributes {dimension_semantics = [#tpu.dimension_semantics<parallel>], iteration_bounds = array<i64: 1>, scalar_prefetch = 0 : i64, scratch_operands = 0 : i64, tpu.core_type = #tpu.core_type<tc>, window_params = [{transform_indices = @transform_0, window_bounds = array<i64: 8, 128>}, {pipeline_mode = #tpu.pipeline_mode<synchronous>, transform_indices = @transform_1, window_bounds = array<i64: 128, 8>}, {pipeline_mode = #tpu.pipeline_mode<synchronous>, transform_indices = @transform_2, window_bounds = array<i64: 128, 1>}, {pipeline_mode = #tpu.pipeline_mode<synchronous>, transform_indices = @transform_3, window_bounds = array<i64: 64, 128>}, {pipeline_mode = #tpu.pipeline_mode<synchronous>, transform_indices = @transform_4, window_bounds = array<i64: 64, 1>}, {pipeline_mode = #tpu.pipeline_mode<synchronous>, transform_indices = @transform_5, window_bounds = array<i64: 8, 64>}, {pipeline_mode = #tpu.pipeline_mode<synchronous>, transform_indices = @transform_6, window_bounds = array<i64: 8, 1>}, {transform_indices = @transform_7, window_bounds = array<i64: 8, 128>}]} {
    %c0 = arith.constant 0 : index
    %c0_0 = arith.constant 0 : index
    %0 = vector.load %arg1[%c0, %c0_0] : memref<8x128xf32, #tpu.memory_space<vmem>>, vector<8x128xf32>
    %c0_1 = arith.constant 0 : index
    %c0_2 = arith.constant 0 : index
    %1 = vector.load %arg2[%c0_1, %c0_2] : memref<128x8xf32, #tpu.memory_space<vmem>>, vector<128x8xf32>
    %cst = arith.constant dense<0.000000e+00> : vector<128x128xf32>
    %2 = tpu.matmul %1, %0, %cst {dimension_numbers = #tpu.dot_dimension_numbers<[1], [0], [0], [1], [0, 0, 1, 1], [], []>} : vector<128x8xf32>, vector<8x128xf32>, vector<128x128xf32> -> vector<128x128xf32>
    %c0_3 = arith.constant 0 : index
    %c0_4 = arith.constant 0 : index
    %3 = vector.load %arg3[%c0_3, %c0_4] : memref<128x1xf32, #tpu.memory_space<vmem>>, vector<128x1xf32>
    %4 = vector.broadcast %3 : vector<128x1xf32> to vector<128x128xf32>
    %5 = arith.addf %2, %4 : vector<128x128xf32>
    %cst_5 = arith.constant 0.000000e+00 : f32
    %6 = vector.broadcast %cst_5 : f32 to vector<128x128xf32>
    %7 = arith.maximumf %5, %6 : vector<128x128xf32>
    %c0_6 = arith.constant 0 : index
    %c0_7 = arith.constant 0 : index
    %8 = vector.load %arg4[%c0_6, %c0_7] : memref<64x128xf32, #tpu.memory_space<vmem>>, vector<64x128xf32>
    %cst_8 = arith.constant dense<0.000000e+00> : vector<64x128xf32>
    %9 = tpu.matmul %8, %7, %cst_8 {dimension_numbers = #tpu.dot_dimension_numbers<[1], [0], [0], [1], [0, 0, 1, 1], [], []>} : vector<64x128xf32>, vector<128x128xf32>, vector<64x128xf32> -> vector<64x128xf32>
    %c0_9 = arith.constant 0 : index
    %c0_10 = arith.constant 0 : index
    %10 = vector.load %arg5[%c0_9, %c0_10] : memref<64x1xf32, #tpu.memory_space<vmem>>, vector<64x1xf32>
    %11 = vector.broadcast %10 : vector<64x1xf32> to vector<64x128xf32>
    %12 = arith.addf %9, %11 : vector<64x128xf32>
    %cst_11 = arith.constant 0.000000e+00 : f32
    %13 = vector.broadcast %cst_11 : f32 to vector<64x128xf32>
    %14 = arith.maximumf %12, %13 : vector<64x128xf32>
    %c0_12 = arith.constant 0 : index
    %c0_13 = arith.constant 0 : index
    %15 = vector.load %arg6[%c0_12, %c0_13] : memref<8x64xf32, #tpu.memory_space<vmem>>, vector<8x64xf32>
    %cst_14 = arith.constant dense<0.000000e+00> : vector<8x128xf32>
    %16 = tpu.matmul %15, %14, %cst_14 {dimension_numbers = #tpu.dot_dimension_numbers<[1], [0], [0], [1], [0, 0, 1, 1], [], []>} : vector<8x64xf32>, vector<64x128xf32>, vector<8x128xf32> -> vector<8x128xf32>
    %c0_15 = arith.constant 0 : index
    %c0_16 = arith.constant 0 : index
    %17 = vector.load %arg7[%c0_15, %c0_16] : memref<8x1xf32, #tpu.memory_space<vmem>>, vector<8x1xf32>
    %18 = vector.broadcast %17 : vector<8x1xf32> to vector<8x128xf32>
    %19 = arith.addf %16, %18 : vector<8x128xf32>
    %20 = math.tanh %19 : vector<8x128xf32>
    %cst_17 = arith.constant 2.000000e+01 : f32
    %21 = vector.broadcast %cst_17 : f32 to vector<8x128xf32>
    %22 = arith.cmpf ogt, %19, %21 : vector<8x128xf32>
    %cst_18 = arith.constant 2.000000e+01 : f32
    %23 = vector.broadcast %cst_18 : f32 to vector<8x128xf32>
    %24 = arith.minimumf %19, %23 : vector<8x128xf32>
    %25 = math.exp %24 : vector<8x128xf32>
    %26 = math.log1p %25 : vector<8x128xf32>
    %27 = arith.select %22, %19, %26 : vector<8x128xi1>, vector<8x128xf32>
    %28 = tpu.iota {dimensions = array<i32: 0>} : vector<8x128xi32>
    %c4_i32 = arith.constant 4 : i32
    %29 = vector.broadcast %c4_i32 : i32 to vector<8x128xi32>
    %30 = arith.cmpi slt, %28, %29 : vector<8x128xi32>
    %31 = arith.select %30, %20, %27 : vector<8x128xi1>, vector<8x128xf32>
    %c0_19 = arith.constant 0 : index
    %c0_20 = arith.constant 0 : index
    %32 = vector.load %arg8[%c0_19, %c0_20] : memref<8x128xf32, #tpu.memory_space<vmem>>, vector<8x128xf32>
    tpu.vector_store %arg8[%c0_19, %c0_20], %31 {strides = array<i32>} : memref<8x128xf32, #tpu.memory_space<vmem>>, vector<8x128xf32>,
    return
  }
  func.func @transform_0(%arg0: i32) -> (i32, i32) {
    %c0_i32 = arith.constant 0 : i32
    %c0_i32_0 = arith.constant 0 : i32
    return %c0_i32, %arg0 : i32, i32
  }
  func.func @transform_1(%arg0: i32) -> (i32, i32) {
    %c0_i32 = arith.constant 0 : i32
    %c0_i32_0 = arith.constant 0 : i32
    %c0_i32_1 = arith.constant 0 : i32
    return %c0_i32, %c0_i32_0 : i32, i32
  }
  func.func @transform_2(%arg0: i32) -> (i32, i32) {
    %c0_i32 = arith.constant 0 : i32
    %c0_i32_0 = arith.constant 0 : i32
    %c0_i32_1 = arith.constant 0 : i32
    return %c0_i32, %c0_i32_0 : i32, i32
  }
  func.func @transform_3(%arg0: i32) -> (i32, i32) {
    %c0_i32 = arith.constant 0 : i32
    %c0_i32_0 = arith.constant 0 : i32
    %c0_i32_1 = arith.constant 0 : i32
    return %c0_i32, %c0_i32_0 : i32, i32
  }
  func.func @transform_4(%arg0: i32) -> (i32, i32) {
    %c0_i32 = arith.constant 0 : i32
    %c0_i32_0 = arith.constant 0 : i32
    %c0_i32_1 = arith.constant 0 : i32
    return %c0_i32, %c0_i32_0 : i32, i32
  }
  func.func @transform_5(%arg0: i32) -> (i32, i32) {
    %c0_i32 = arith.constant 0 : i32
    %c0_i32_0 = arith.constant 0 : i32
    %c0_i32_1 = arith.constant 0 : i32
    return %c0_i32, %c0_i32_0 : i32, i32
  }
  func.func @transform_6(%arg0: i32) -> (i32, i32) {
    %c0_i32 = arith.constant 0 : i32
    %c0_i32_0 = arith.constant 0 : i32
    %c0_i32_1 = arith.constant 0 : i32
    return %c0_i32, %c0_i32_0 : i32, i32
  }
  func.func @transform_7(%arg0: i32) -> (i32, i32) {
    %c0_i32 = arith.constant 0 : i32
    %c0_i32_0 = arith.constant 0 : i32
    return %c0_i32, %arg0 : i32, i32
  }
}

</mosaic_0001>

<llo_original>
// kernel: policy_forward.1
$region0: #{policy_forward.1}
  #allocation0 [shape = 'u32[]', space=smem, size = 0x4, offset = 0x4, fixed_abs, tag = 'smem constant byte address 0x4 - core index']
  #allocation1 [shape = 'u32[144,128]{1,0:T(1,128)}', space=vmem, size = 0x12000, scoped, tag = 'internal scratch']
  %s0 = inlined_call_operand.vmem [shape: f32[8,128], index: 0, kind: input, shape index: {}]
  %s1 = inlined_call_operand.vmem [shape: f32[128,8], index: 1, kind: input, shape index: {}]
  %s2 = inlined_call_operand.vmem [shape: f32[128,1], index: 2, kind: input, shape index: {}]
  %s3 = inlined_call_operand.vmem [shape: f32[64,128], index: 3, kind: input, shape index: {}]
  %s4 = inlined_call_operand.vmem [shape: f32[64,1], index: 4, kind: input, shape index: {}]
  %s5 = inlined_call_operand.vmem [shape: f32[8,64], index: 5, kind: input, shape index: {}]
  %s6 = inlined_call_operand.vmem [shape: f32[8,1], index: 6, kind: input, shape index: {}]
  %s7 = inlined_call_operand.vmem [shape: f32[8,128], index: 7, kind: output, shape index: {}]
  %s8 = sld [smem:[#allocation0]]
  $region38: #{policy_forward.1} parent=0
    _
  %s10 = ssub.s32 1, %s8
  %s11 = scalar_select 0, %s10, %s8
  // Predicated region
  $region2: #{policy_forward.1} parent=0 // pred_check
    _
  $region3: #{policy_forward.1} parent=0 // pred_check_branch
    %13 = sbr.rel (0) target = $region5
  $region4: #{policy_forward.1} parent=0 // pred_region
    _
  $region5: #{policy_forward.1} parent=0 // pred_fallthru
    _
  // Predicated region
  $region6: #{policy_forward.1} parent=0 // pred_check
    _
  $region7: #{policy_forward.1} parent=0 // pred_check_branch
    %15 = sbr.rel (0) target = $region9
  $region8: #{policy_forward.1} parent=0 // pred_region
    _
  $region9: #{policy_forward.1} parent=0 // pred_fallthru
    _
  // Predicated region
  $region10: #{policy_forward.1} parent=0 // pred_check
    _
  $region11: #{policy_forward.1} parent=0 // pred_check_branch
    %17 = sbr.rel (0) target = $region13
  $region12: #{policy_forward.1} parent=0 // pred_region
    _
  $region13: #{policy_forward.1} parent=0 // pred_fallthru
    _
  // Predicated region
  $region14: #{policy_forward.1} parent=0 // pred_check
    _
  $region15: #{policy_forward.1} parent=0 // pred_check_branch
    %19 = sbr.rel (0) target = $region17
  $region16: #{policy_forward.1} parent=0 // pred_region
    _
  $region17: #{policy_forward.1} parent=0 // pred_fallthru
    _
  // Predicated region
  $region18: #{policy_forward.1} parent=0 // pred_check
    _
  $region19: #{policy_forward.1} parent=0 // pred_check_branch
    %21 = sbr.rel (0) target = $region21
  $region20: #{policy_forward.1} parent=0 // pred_region
    _
  $region21: #{policy_forward.1} parent=0 // pred_fallthru
    _
  // Predicated region
  $region22: #{policy_forward.1} parent=0 // pred_check
    _
  $region23: #{policy_forward.1} parent=0 // pred_check_branch
    %23 = sbr.rel (0) target = $region25
  $region24: #{policy_forward.1} parent=0 // pred_region
    _
  $region25: #{policy_forward.1} parent=0 // pred_fallthru
    _
  // Predicated region
  $region26: #{policy_forward.1} parent=0 // pred_check
    _
  $region27: #{policy_forward.1} parent=0 // pred_check_branch
    %25 = sbr.rel (0) target = $region29
  $region28: #{policy_forward.1} parent=0 // pred_region
    _
  $region29: #{policy_forward.1} parent=0 // pred_fallthru
    _
  %v26 = vld [vmem:[%s0] sm:$0xff]
  %v27 = vld [vmem:[%s1] sm:$0xff]
  %v28 = vld [vmem:[%s1 + $0x8] sm:$0xff]
  %v29 = vld [vmem:[%s1 + $0x10] sm:$0xff]
  %v30 = vld [vmem:[%s1 + $0x18] sm:$0xff]
  %v31 = vld [vmem:[%s1 + $0x20] sm:$0xff]
  %v32 = vld [vmem:[%s1 + $0x28] sm:$0xff]
  %v33 = vld [vmem:[%s1 + $0x30] sm:$0xff]
  %v34 = vld [vmem:[%s1 + $0x38] sm:$0xff]
  %v35 = vld [vmem:[%s1 + $0x40] sm:$0xff]
  %v36 = vld [vmem:[%s1 + $0x48] sm:$0xff]
  %v37 = vld [vmem:[%s1 + $0x50] sm:$0xff]
  %v38 = vld [vmem:[%s1 + $0x58] sm:$0xff]
  %v39 = vld [vmem:[%s1 + $0x60] sm:$0xff]
  %v40 = vld [vmem:[%s1 + $0x68] sm:$0xff]
  %v41 = vld [vmem:[%s1 + $0x70] sm:$0xff]
  %v42 = vld [vmem:[%s1 + $0x78] sm:$0xff]
  %v43 = vld [vmem:[%s2] sm:$0xff]
  %v44 = vld [vmem:[%s2 + $0x8] sm:$0xff]
  %v45 = vld [vmem:[%s2 + $0x10] sm:$0xff]
  %v46 = vld [vmem:[%s2 + $0x18] sm:$0xff]
  %v47 = vld [vmem:[%s2 + $0x20] sm:$0xff]
  %v48 = vld [vmem:[%s2 + $0x28] sm:$0xff]
  %v49 = vld [vmem:[%s2 + $0x30] sm:$0xff]
  %v50 = vld [vmem:[%s2 + $0x38] sm:$0xff]
  %v51 = vld [vmem:[%s2 + $0x40] sm:$0xff]
  %v52 = vld [vmem:[%s2 + $0x48] sm:$0xff]
  %v53 = vld [vmem:[%s2 + $0x50] sm:$0xff]
  %v54 = vld [vmem:[%s2 + $0x58] sm:$0xff]
  %v55 = vld [vmem:[%s2 + $0x60] sm:$0xff]
  %v56 = vld [vmem:[%s2 + $0x68] sm:$0xff]
  %v57 = vld [vmem:[%s2 + $0x70] sm:$0xff]
  %v58 = vld [vmem:[%s2 + $0x78] sm:$0xff]
  %60 = vset.pattern.permute.xlu0 0
  %61 = vperm.xlu0 %60, %v43
  %v62 = vpop.permute.xlu0 %61
  %65 = vset.pattern.permute.xlu0 0
  %66 = vperm.xlu0 %65, %v44
  %v67 = vpop.permute.xlu0 %66
  %70 = vset.pattern.permute.xlu0 0
  %71 = vperm.xlu0 %70, %v45
  %v72 = vpop.permute.xlu0 %71
  %75 = vset.pattern.permute.xlu0 0
  %76 = vperm.xlu0 %75, %v46
  %v77 = vpop.permute.xlu0 %76
  %80 = vset.pattern.permute.xlu0 0
  %81 = vperm.xlu0 %80, %v47
  %v82 = vpop.permute.xlu0 %81
  %85 = vset.pattern.permute.xlu0 0
  %86 = vperm.xlu0 %85, %v48
  %v87 = vpop.permute.xlu0 %86
  %90 = vset.pattern.permute.xlu0 0
  %91 = vperm.xlu0 %90, %v49
  %v92 = vpop.permute.xlu0 %91
  %95 = vset.pattern.permute.xlu0 0
  %96 = vperm.xlu0 %95, %v50
  %v97 = vpop.permute.xlu0 %96
  %100 = vset.pattern.permute.xlu0 0
  %101 = vperm.xlu0 %100, %v51
  %v102 = vpop.permute.xlu0 %101
  %105 = vset.pattern.permute.xlu0 0
  %106 = vperm.xlu0 %105, %v52
  %v107 = vpop.permute.xlu0 %106
  %110 = vset.pattern.permute.xlu0 0
  %111 = vperm.xlu0 %110, %v53
  %v112 = vpop.permute.xlu0 %111
  %115 = vset.pattern.permute.xlu0 0
  %116 = vperm.xlu0 %115, %v54
  %v117 = vpop.permute.xlu0 %116
  %120 = vset.pattern.permute.xlu0 0
  %121 = vperm.xlu0 %120, %v55
  %v122 = vpop.permute.xlu0 %121
  %125 = vset.pattern.permute.xlu0 0
  %126 = vperm.xlu0 %125, %v56
  %v127 = vpop.permute.xlu0 %126
  %130 = vset.pattern.permute.xlu0 0
  %131 = vperm.xlu0 %130, %v57
  %v132 = vpop.permute.xlu0 %131
  %135 = vset.pattern.permute.xlu0 0
  %136 = vperm.xlu0 %135, %v58
  %v137 = vpop.permute.xlu0 %136
  %vm139 = vcmask 64512
  %v141 = vsel %vm139, %v27, 0
  %v144 = vsel %vm139, %v28, 0
  %v147 = vsel %vm139, %v29, 0
  %v150 = vsel %vm139, %v30, 0
  %v153 = vsel %vm139, %v31, 0
  %v156 = vsel %vm139, %v32, 0
  %v159 = vsel %vm139, %v33, 0
  %v162 = vsel %vm139, %v34, 0
  %v165 = vsel %vm139, %v35, 0
  %v168 = vsel %vm139, %v36, 0
  %v171 = vsel %vm139, %v37, 0
  %v174 = vsel %vm139, %v38, 0
  %v177 = vsel %vm139, %v39, 0
  %v180 = vsel %vm139, %v40, 0
  %v183 = vsel %vm139, %v41, 0
  %v186 = vsel %vm139, %v42, 0
  %188 = vmatprep.subr.mxu0 0.0
  %189 = vmatpush1.msra.mxu0 %v26
  %190 = vmatprep.subr.mxu0 0.0
  %191 = vmatpush1.msra.mxu0 0.0
  %192 = vmatprep.subr.mxu0 0.0
  %193 = vmatpush1.msra.mxu0 0.0
  %194 = vmatprep.subr.mxu0 0.0
  %195 = vmatpush1.msra.mxu0 0.0
  %196 = vmatprep.subr.mxu0 0.0
  %197 = vmatpush1.msra.mxu0 0.0
  %198 = vmatprep.subr.mxu0 0.0
  %199 = vmatpush1.msra.mxu0 0.0
  %200 = vmatprep.subr.mxu0 0.0
  %201 = vmatpush1.msra.mxu0 0.0
  %202 = vmatprep.subr.mxu0 0.0
  %203 = vmatpush1.msra.mxu0 0.0
  %204 = vmatprep.subr.mxu0 0.0
  %205 = vmatpush1.msra.mxu0 0.0
  %206 = vmatprep.subr.mxu0 0.0
  %207 = vmatpush1.msra.mxu0 0.0
  %208 = vmatprep.subr.mxu0 0.0
  %209 = vmatpush1.msra.mxu0 0.0
  %210 = vmatprep.subr.mxu0 0.0
  %211 = vmatpush1.msra.mxu0 0.0
  %212 = vmatprep.subr.mxu0 0.0
  %213 = vmatpush1.msra.mxu0 0.0
  %214 = vmatprep.subr.mxu0 0.0
  %215 = vmatpush1.msra.mxu0 0.0
  %216 = vmatprep.subr.mxu0 0.0
  %217 = vmatpush1.msra.mxu0 0.0
  %218 = vmatprep.subr.mxu0 0.0
  %219 = vmatpush1.msra.mxu0 0.0
  %220 = vmatprep.subr.mxu0 0.0
  %221 = vmatpush1.msra.mxu0 0.0
  %222 = vmatprep.subr.mxu0 0.0
  %223 = vmatpush1.msra.mxu0 0.0
  %224 = vmatprep.subr.mxu0 0.0
  %225 = vmatpush1.msra.mxu0 0.0
  %226 = vmatprep.subr.mxu0 0.0
  %227 = vmatpush1.msra.mxu0 0.0
  %228 = vmatprep.subr.mxu0 0.0
  %229 = vmatpush1.msra.mxu0 0.0
  %230 = vmatprep.subr.mxu0 0.0
  %231 = vmatpush1.msra.mxu0 0.0
  %232 = vmatprep.subr.mxu0 0.0
  %233 = vmatpush1.msra.mxu0 0.0
  %234 = vmatprep.subr.mxu0 0.0
  %235 = vmatpush1.msra.mxu0 0.0
  %236 = vmatprep.subr.mxu0 0.0
  %237 = vmatpush1.msra.mxu0 0.0
  %238 = vmatprep.subr.mxu0 0.0
  %239 = vmatpush1.msra.mxu0 0.0
  %240 = vmatprep.subr.mxu0 0.0
  %241 = vmatpush1.msra.mxu0 0.0
  %242 = vmatprep.subr.mxu0 0.0
  %243 = vmatpush1.msra.mxu0 0.0
  %244 = vmatprep.subr.mxu0 0.0
  %245 = vmatpush1.msra.mxu0 0.0
  %246 = vmatprep.subr.mxu0 0.0
  %247 = vmatpush1.msra.mxu0 0.0
  %248 = vmatprep.subr.mxu0 0.0
  %249 = vmatpush1.msra.mxu0 0.0
  %250 = vmatprep.subr.mxu0 0.0
  %251 = vmatpush1.msra.mxu0 0.0
  %252 = vmatprep.mubr.f32.mxu0 0.0
  %253 = vmatmul.mubr.f32.gmra.mrb[0].mxu0 %v141
  %v254 = vpop.f32.mrb[0].mxu0
  %v255 = vadd.f32 %v62, %v254
  %v256 = vpop.f32.mrb[0].mxu0
  %257 = vmatprep.mubr.f32.mxu0 0.0
  %258 = vmatmul.mubr.f32.gmra.mrb[0].mxu0 %v144
  %v259 = vpop.f32.mrb[0].mxu0
  %v260 = vadd.f32 %v67, %v259
  %v261 = vpop.f32.mrb[0].mxu0
  %262 = vmatprep.mubr.f32.mxu0 0.0
  %263 = vmatmul.mubr.f32.gmra.mrb[0].mxu0 %v147
  %v264 = vpop.f32.mrb[0].mxu0
  %v265 = vadd.f32 %v72, %v264
  %v266 = vpop.f32.mrb[0].mxu0
  %267 = vmatprep.mubr.f32.mxu0 0.0
  %268 = vmatmul.mubr.f32.gmra.mrb[0].mxu0 %v150
  %v269 = vpop.f32.mrb[0].mxu0
  %v270 = vadd.f32 %v77, %v269
  %v271 = vpop.f32.mrb[0].mxu0
  %272 = vmatprep.mubr.f32.mxu0 0.0
  %273 = vmatmul.mubr.f32.gmra.mrb[0].mxu0 %v153
  %v274 = vpop.f32.mrb[0].mxu0
  %v275 = vadd.f32 %v82, %v274
  %v276 = vpop.f32.mrb[0].mxu0
  %277 = vmatprep.mubr.f32.mxu0 0.0
  %278 = vmatmul.mubr.f32.gmra.mrb[0].mxu0 %v156
  %v279 = vpop.f32.mrb[0].mxu0
  %v280 = vadd.f32 %v87, %v279
  %v281 = vpop.f32.mrb[0].mxu0
  %282 = vmatprep.mubr.f32.mxu0 0.0
  %283 = vmatmul.mubr.f32.gmra.mrb[0].mxu0 %v159
  %v284 = vpop.f32.mrb[0].mxu0
  %v285 = vadd.f32 %v92, %v284
  %v286 = vpop.f32.mrb[0].mxu0
  %287 = vmatprep.mubr.f32.mxu0 0.0
  %288 = vmatmul.mubr.f32.gmra.mrb[0].mxu0 %v162
  %v289 = vpop.f32.mrb[0].mxu0
  %v290 = vadd.f32 %v97, %v289
  %v291 = vpop.f32.mrb[0].mxu0
  %292 = vmatprep.mubr.f32.mxu0 0.0
  %293 = vmatmul.mubr.f32.gmra.mrb[0].mxu0 %v165
  %v294 = vpop.f32.mrb[0].mxu0
  %v295 = vadd.f32 %v102, %v294
  %v296 = vpop.f32.mrb[0].mxu0
  %297 = vmatprep.mubr.f32.mxu0 0.0
  %298 = vmatmul.mubr.f32.gmra.mrb[0].mxu0 %v168
  %v299 = vpop.f32.mrb[0].mxu0
  %v300 = vadd.f32 %v107, %v299
  %v301 = vpop.f32.mrb[0].mxu0
  %302 = vmatprep.mubr.f32.mxu0 0.0
  %303 = vmatmul.mubr.f32.gmra.mrb[0].mxu0 %v171
  %v304 = vpop.f32.mrb[0].mxu0
  %v305 = vadd.f32 %v112, %v304
  %v306 = vpop.f32.mrb[0].mxu0
  %307 = vmatprep.mubr.f32.mxu0 0.0
  %308 = vmatmul.mubr.f32.gmra.mrb[0].mxu0 %v174
  %v309 = vpop.f32.mrb[0].mxu0
  %v310 = vadd.f32 %v117, %v309
  %v311 = vpop.f32.mrb[0].mxu0
  %312 = vmatprep.mubr.f32.mxu0 0.0
  %313 = vmatmul.mubr.f32.gmra.mrb[0].mxu0 %v177
  %v314 = vpop.f32.mrb[0].mxu0
  %v315 = vadd.f32 %v122, %v314
  %v316 = vpop.f32.mrb[0].mxu0
  %317 = vmatprep.mubr.f32.mxu0 0.0
  %318 = vmatmul.mubr.f32.gmra.mrb[0].mxu0 %v180
  %v319 = vpop.f32.mrb[0].mxu0
  %v320 = vadd.f32 %v127, %v319
  %v321 = vpop.f32.mrb[0].mxu0
  %322 = vmatprep.mubr.f32.mxu0 0.0
  %323 = vmatmul.mubr.f32.gmra.mrb[0].mxu0 %v183
  %v324 = vpop.f32.mrb[0].mxu0
  %v325 = vadd.f32 %v132, %v324
  %v326 = vpop.f32.mrb[0].mxu0
  %327 = vmatprep.mubr.f32.mxu0 0.0
  %328 = vmatmul.mubr.f32.gmra.mrb[0].mxu0 %v186
  %v329 = vpop.f32.mrb[0].mxu0
  %v330 = vadd.f32 %v137, %v329
  %v331 = vpop.f32.mrb[0].mxu0
  %332 = vdwg.mxu0
  %v333 = vmax.f32 %v255, 0.0
  %v334 = vmax.f32 %v260, 0.0
  %v335 = vmax.f32 %v265, 0.0
  %v336 = vmax.f32 %v270, 0.0
  %v337 = vmax.f32 %v275, 0.0
  %v338 = vmax.f32 %v280, 0.0
  %v339 = vmax.f32 %v285, 0.0
  %v340 = vmax.f32 %v290, 0.0
  %v341 = vmax.f32 %v295, 0.0
  %v342 = vmax.f32 %v300, 0.0
  %v343 = vmax.f32 %v305, 0.0
  %v344 = vmax.f32 %v310, 0.0
  %v345 = vmax.f32 %v315, 0.0
  %v346 = vmax.f32 %v320, 0.0
  %v347 = vmax.f32 %v325, 0.0
  %v348 = vmax.f32 %v330, 0.0
  %v349 = vld [vmem:[%s3] sm:$0xff]
  %v350 = vld [vmem:[%s3 + $0x8] sm:$0xff]
  %v351 = vld [vmem:[%s3 + $0x10] sm:$0xff]
  %v352 = vld [vmem:[%s3 + $0x18] sm:$0xff]
  %v353 = vld [vmem:[%s3 + $0x20] sm:$0xff]
  %v354 = vld [vmem:[%s3 + $0x28] sm:$0xff]
  %v355 = vld [vmem:[%s3 + $0x30] sm:$0xff]
  %v356 = vld [vmem:[%s3 + $0x38] sm:$0xff]
  %v357 = vld [vmem:[%s4] sm:$0xff]
  %v358 = vld [vmem:[%s4 + $0x8] sm:$0xff]
  %v359 = vld [vmem:[%s4 + $0x10] sm:$0xff]
  %v360 = vld [vmem:[%s4 + $0x18] sm:$0xff]
  %v361 = vld [vmem:[%s4 + $0x20] sm:$0xff]
  %v362 = vld [vmem:[%s4 + $0x28] sm:$0xff]
  %v363 = vld [vmem:[%s4 + $0x30] sm:$0xff]
  %v364 = vld [vmem:[%s4 + $0x38] sm:$0xff]
  %366 = vset.pattern.permute.xlu0 0
  %367 = vperm.xlu0 %366, %v357
  %v368 = vpop.permute.xlu0 %367
  %371 = vset.pattern.permute.xlu0 0
  %372 = vperm.xlu0 %371, %v358
  %v373 = vpop.permute.xlu0 %372
  %376 = vset.pattern.permute.xlu0 0
  %377 = vperm.xlu0 %376, %v359
  %v378 = vpop.permute.xlu0 %377
  %381 = vset.pattern.permute.xlu0 0
  %382 = vperm.xlu0 %381, %v360
  %v383 = vpop.permute.xlu0 %382
  %386 = vset.pattern.permute.xlu0 0
  %387 = vperm.xlu0 %386, %v361
  %v388 = vpop.permute.xlu0 %387
  %391 = vset.pattern.permute.xlu0 0
  %392 = vperm.xlu0 %391, %v362
  %v393 = vpop.permute.xlu0 %392
  %396 = vset.pattern.permute.xlu0 0
  %397 = vperm.xlu0 %396, %v363
  %v398 = vpop.permute.xlu0 %397
  %401 = vset.pattern.permute.xlu0 0
  %402 = vperm.xlu0 %401, %v364
  %v403 = vpop.permute.xlu0 %402
  %405 = vmatprep.subr.mxu0 0.0
  %406 = vmatpush1.msra.mxu0 %v333
  %407 = vmatprep.subr.mxu0 0.0
  %408 = vmatpush1.msra.mxu0 %v334
  %409 = vmatprep.subr.mxu0 0.0
  %410 = vmatpush1.msra.mxu0 %v335
  %411 = vmatprep.subr.mxu0 0.0
  %412 = vmatpush1.msra.mxu0 %v336
  %413 = vmatprep.subr.mxu0 0.0
  %414 = vmatpush1.msra.mxu0 %v337
  %415 = vmatprep.subr.mxu0 0.0
  %416 = vmatpush1.msra.mxu0 %v338
  %417 = vmatprep.subr.mxu0 0.0
  %418 = vmatpush1.msra.mxu0 %v339
  %419 = vmatprep.subr.mxu0 0.0
  %420 = vmatpush1.msra.mxu0 %v340
  %421 = vmatprep.subr.mxu0 0.0
  %422 = vmatpush1.msra.mxu0 %v341
  %423 = vmatprep.subr.mxu0 0.0
  %424 = vmatpush1.msra.mxu0 %v342
  %425 = vmatprep.subr.mxu0 0.0
  %426 = vmatpush1.msra.mxu0 %v343
  %427 = vmatprep.subr.mxu0 0.0
  %428 = vmatpush1.msra.mxu0 %v344
  %429 = vmatprep.subr.mxu0 0.0
  %430 = vmatpush1.msra.mxu0 %v345
  %431 = vmatprep.subr.mxu0 0.0
  %432 = vmatpush1.msra.mxu0 %v346
  %433 = vmatprep.subr.mxu0 0.0
  %434 = vmatpush1.msra.mxu0 %v347
  %435 = vmatprep.subr.mxu0 0.0
  %436 = vmatpush1.msra.mxu0 %v348
  %437 = vmatprep.subr.mxu0 0.0
  %438 = vmatpush1.msra.mxu0 0.0
  %439 = vmatprep.subr.mxu0 0.0
  %440 = vmatpush1.msra.mxu0 0.0
  %441 = vmatprep.subr.mxu0 0.0
  %442 = vmatpush1.msra.mxu0 0.0
  %443 = vmatprep.subr.mxu0 0.0
  %444 = vmatpush1.msra.mxu0 0.0
  %445 = vmatprep.subr.mxu0 0.0
  %446 = vmatpush1.msra.mxu0 0.0
  %447 = vmatprep.subr.mxu0 0.0
  %448 = vmatpush1.msra.mxu0 0.0
  %449 = vmatprep.subr.mxu0 0.0
  %450 = vmatpush1.msra.mxu0 0.0
  %451 = vmatprep.subr.mxu0 0.0
  %452 = vmatpush1.msra.mxu0 0.0
  %453 = vmatprep.subr.mxu0 0.0
  %454 = vmatpush1.msra.mxu0 0.0
  %455 = vmatprep.subr.mxu0 0.0
  %456 = vmatpush1.msra.mxu0 0.0
  %457 = vmatprep.subr.mxu0 0.0
  %458 = vmatpush1.msra.mxu0 0.0
  %459 = vmatprep.subr.mxu0 0.0
  %460 = vmatpush1.msra.mxu0 0.0
  %461 = vmatprep.subr.mxu0 0.0
  %462 = vmatpush1.msra.mxu0 0.0
  %463 = vmatprep.subr.mxu0 0.0
  %464 = vmatpush1.msra.mxu0 0.0
  %465 = vmatprep.subr.mxu0 0.0
  %466 = vmatpush1.msra.mxu0 0.0
  %467 = vmatprep.subr.mxu0 0.0
  %468 = vmatpush1.msra.mxu0 0.0
  %469 = vmatprep.mubr.f32.mxu0 0.0
  %470 = vmatmul.mubr.f32.gmra.mrb[0].mxu0 %v349
  %v471 = vpop.f32.mrb[0].mxu0
  %v472 = vadd.f32 %v368, %v471
  %v473 = vpop.f32.mrb[0].mxu0
  %474 = vmatprep.mubr.f32.mxu0 0.0
  %475 = vmatmul.mubr.f32.gmra.mrb[0].mxu0 %v350
  %v476 = vpop.f32.mrb[0].mxu0
  %v477 = vadd.f32 %v373, %v476
  %v478 = vpop.f32.mrb[0].mxu0
  %479 = vmatprep.mubr.f32.mxu0 0.0
  %480 = vmatmul.mubr.f32.gmra.mrb[0].mxu0 %v351
  %v481 = vpop.f32.mrb[0].mxu0
  %v482 = vadd.f32 %v378, %v481
  %v483 = vpop.f32.mrb[0].mxu0
  %484 = vmatprep.mubr.f32.mxu0 0.0
  %485 = vmatmul.mubr.f32.gmra.mrb[0].mxu0 %v352
  %v486 = vpop.f32.mrb[0].mxu0
  %v487 = vadd.f32 %v383, %v486
  %v488 = vpop.f32.mrb[0].mxu0
  %489 = vmatprep.mubr.f32.mxu0 0.0
  %490 = vmatmul.mubr.f32.gmra.mrb[0].mxu0 %v353
  %v491 = vpop.f32.mrb[0].mxu0
  %v492 = vadd.f32 %v388, %v491
  %v493 = vpop.f32.mrb[0].mxu0
  %494 = vmatprep.mubr.f32.mxu0 0.0
  %495 = vmatmul.mubr.f32.gmra.mrb[0].mxu0 %v354
  %v496 = vpop.f32.mrb[0].mxu0
  %v497 = vadd.f32 %v393, %v496
  %v498 = vpop.f32.mrb[0].mxu0
  %499 = vmatprep.mubr.f32.mxu0 0.0
  %500 = vmatmul.mubr.f32.gmra.mrb[0].mxu0 %v355
  %v501 = vpop.f32.mrb[0].mxu0
  %v502 = vadd.f32 %v398, %v501
  %v503 = vpop.f32.mrb[0].mxu0
  %504 = vmatprep.mubr.f32.mxu0 0.0
  %505 = vmatmul.mubr.f32.gmra.mrb[0].mxu0 %v356
  %v506 = vpop.f32.mrb[0].mxu0
  %v507 = vadd.f32 %v403, %v506
  %v508 = vpop.f32.mrb[0].mxu0
  %509 = vdwg.mxu0
  %v510 = vmax.f32 %v472, 0.0
  %v511 = vmax.f32 %v477, 0.0
  %v512 = vmax.f32 %v482, 0.0
  %v513 = vmax.f32 %v487, 0.0
  %v514 = vmax.f32 %v492, 0.0
  %v515 = vmax.f32 %v497, 0.0
  %v516 = vmax.f32 %v502, 0.0
  %v517 = vmax.f32 %v507, 0.0
  %v518 = vld [vmem:[%s5] sm:$0xff]
  %v519 = vld [vmem:[%s6] sm:$0xff]
  %521 = vset.pattern.permute.xlu0 0
  %522 = vperm.xlu0 %521, %v519
  %v523 = vpop.permute.xlu0 %522
  %vm525 = vcmask 523264
  %v527 = vsel %vm525, %v518, 0
  %529 = vmatprep.subr.mxu0 0.0
  %530 = vmatpush1.msra.mxu0 %v510
  %531 = vmatprep.subr.mxu0 0.0
  %532 = vmatpush1.msra.mxu0 %v511
  %533 = vmatprep.subr.mxu0 0.0
  %534 = vmatpush1.msra.mxu0 %v512
  %535 = vmatprep.subr.mxu0 0.0
  %536 = vmatpush1.msra.mxu0 %v513
  %537 = vmatprep.subr.mxu0 0.0
  %538 = vmatpush1.msra.mxu0 %v514
  %539 = vmatprep.subr.mxu0 0.0
  %540 = vmatpush1.msra.mxu0 %v515
  %541 = vmatprep.subr.mxu0 0.0
  %542 = vmatpush1.msra.mxu0 %v516
  %543 = vmatprep.subr.mxu0 0.0
  %544 = vmatpush1.msra.mxu0 %v517
  %545 = vmatprep.subr.mxu0 0.0
  %546 = vmatpush1.msra.mxu0 0.0
  %547 = vmatprep.subr.mxu0 0.0
  %548 = vmatpush1.msra.mxu0 0.0
  %549 = vmatprep.subr.mxu0 0.0
  %550 = vmatpush1.msra.mxu0 0.0
  %551 = vmatprep.subr.mxu0 0.0
  %552 = vmatpush1.msra.mxu0 0.0
  %553 = vmatprep.subr.mxu0 0.0
  %554 = vmatpush1.msra.mxu0 0.0
  %555 = vmatprep.subr.mxu0 0.0
  %556 = vmatpush1.msra.mxu0 0.0
  %557 = vmatprep.subr.mxu0 0.0
  %558 = vmatpush1.msra.mxu0 0.0
  %559 = vmatprep.subr.mxu0 0.0
  %560 = vmatpush1.msra.mxu0 0.0
  %561 = vmatprep.subr.mxu0 0.0
  %562 = vmatpush1.msra.mxu0 0.0
  %563 = vmatprep.subr.mxu0 0.0
  %564 = vmatpush1.msra.mxu0 0.0
  %565 = vmatprep.subr.mxu0 0.0
  %566 = vmatpush1.msra.mxu0 0.0
  %567 = vmatprep.subr.mxu0 0.0
  %568 = vmatpush1.msra.mxu0 0.0
  %569 = vmatprep.subr.mxu0 0.0
  %570 = vmatpush1.msra.mxu0 0.0
  %571 = vmatprep.subr.mxu0 0.0
  %572 = vmatpush1.msra.mxu0 0.0
  %573 = vmatprep.subr.mxu0 0.0
  %574 = vmatpush1.msra.mxu0 0.0
  %575 = vmatprep.subr.mxu0 0.0
  %576 = vmatpush1.msra.mxu0 0.0
  %577 = vmatprep.subr.mxu0 0.0
  %578 = vmatpush1.msra.mxu0 0.0
  %579 = vmatprep.subr.mxu0 0.0
  %580 = vmatpush1.msra.mxu0 0.0
  %581 = vmatprep.subr.mxu0 0.0
  %582 = vmatpush1.msra.mxu0 0.0
  %583 = vmatprep.subr.mxu0 0.0
  %584 = vmatpush1.msra.mxu0 0.0
  %585 = vmatprep.subr.mxu0 0.0
  %586 = vmatpush1.msra.mxu0 0.0
  %587 = vmatprep.subr.mxu0 0.0
  %588 = vmatpush1.msra.mxu0 0.0
  %589 = vmatprep.subr.mxu0 0.0
  %590 = vmatpush1.msra.mxu0 0.0
  %591 = vmatprep.subr.mxu0 0.0
  %592 = vmatpush1.msra.mxu0 0.0
  %593 = vmatprep.mubr.f32.mxu0 0.0
  %594 = vmatmul.mubr.f32.gmra.mrb[0].mxu0 %v527
  %v595 = vpop.f32.mrb[0].mxu0
  %v596 = vadd.f32 %v523, %v595
  %v597 = vpop.f32.mrb[0].mxu0
  %598 = vdwg.mxu0
  %v599 = vtanh.pop %v596
  %vm600 = vcmp.gt.f32.partialorder %v596, 20.0
  %v601 = vmin.f32 %v596, 20.0
  %v602 = vmul.f32 %v601, 1.442695
  %v603 = vpow.pop %v602
  %v604 = vadd.f32 %v603, 1.0
  %v605 = vlog2.pop %v604
  %v606 = vmul.f32 %v605, 0.6931472
  %v607 = vmul.f32 -0.5, %v603
  %v608 = vadd.f32 %v607, 1.0
  %v609 = vmul.f32 %v608, %v603
  %v610 = vand.u32 2147483647, %v603
  %vm611 = vcmp.lt.f32.partialorder %v610, 0.0004427343
  %v612 = vsel %vm611, %v609, %v606
  %v613 = vsel %vm600, %v596, %v612
  %v614 = vlaneseq
  %v615 = vshrl.u32 %v614, 7
  %vm616 = vcmp.lt.s32.totalorder %v615, 4
  %v617 = vsel %vm616, %v599, %v613
  %618 = vst [vmem:[%s7] sm:$0xff] %v617
  // Predicated region
  $region30: #{policy_forward.1} parent=0 // pred_check
    _
  $region31: #{policy_forward.1} parent=0 // pred_check_branch
    %620 = sbr.rel (0) target = $region33
  $region32: #{policy_forward.1} parent=0 // pred_region
    _
  $region33: #{policy_forward.1} parent=0 // pred_fallthru
    _
  // Predicated region
  $region34: #{policy_forward.1} parent=0 // pred_check
    _
  $region35: #{policy_forward.1} parent=0 // pred_check_branch
    %622 = sbr.rel (0) target = $region37
  $region36: #{policy_forward.1} parent=0 // pred_region
    _
  $region37: #{policy_forward.1} parent=0 // pred_fallthru
    _

</llo_original>
